<compile_context>
chip_gen: v7x
topology: tpu7x:2x2x1
jax: 0.10.0
libtpu: 0.0.40
codegen_flags: <defaults>
</compile_context>

<pallas_src>
import jax
import jax.numpy as jnp
from jax.experimental import pallas as pl
from jax.experimental.pallas import tpu as pltpu

_LANE = 128
_SUBLANE = 8
_TARGET_BLOCK_BYTES = 4 << 20      # 4 MiB per buffer per block
_VMEM_LIMIT_BYTES = 48 << 20       # explicit raise above v5e's 16 MiB default


def _scale_kernel(scale_ref, x_ref, o_ref):
    # scale_ref: SMEM (1, 1) f32; x_ref: VMEM (block_rows, 128) input tile;
    # o_ref: VMEM (block_rows, 128) output tile (possibly promoted dtype).
    s = scale_ref[0, 0]
    # Compute in the output dtype: native bf16/f16 on v6e/v7x VPUs, f32 for
    # f32 or promoted-integer inputs.
    o_ref[...] = x_ref[...].astype(o_ref.dtype) * s.astype(o_ref.dtype)


def _scale_slab(slab: jax.Array, scale_f32: jax.Array, out_dtype) -> jax.Array:
    """Run the Pallas kernel on a lane-dense (rows, 128) slab."""
    rows = slab.shape[0]
    in_itemsize = jnp.dtype(slab.dtype).itemsize
    out_itemsize = jnp.dtype(out_dtype).itemsize

    # Sublane packing multiple for the narrowest dtype touched (8 for 32-bit,
    # 16 for 16-bit, 32 for 8-bit).
    sublane_mult = max(_SUBLANE, 32 // min(in_itemsize, out_itemsize))
    # Byte-budget sizing: ~4 MiB for the widest buffer in the pair.
    budget_rows = _TARGET_BLOCK_BYTES // (_LANE * max(in_itemsize, out_itemsize))
    budget_rows = max((budget_rows // sublane_mult) * sublane_mult, sublane_mult)

    if rows <= budget_rows:
        # Single block equal to the full array dims (legal for any row count).
        block_rows = rows
    else:
        # Multiple blocks; block_rows is a multiple of the packing sublane
        # count, boundary block (if any) is masked by Pallas.
        block_rows = budget_rows
    grid = (pl.cdiv(rows, block_rows),)

    scale_arr = scale_f32.reshape(1, 1)
    n_elems = rows * _LANE

    return pl.pallas_call(
        _scale_kernel,
        out_shape=jax.ShapeDtypeStruct((rows, _LANE), out_dtype),
        grid_spec=pltpu.PrefetchScalarGridSpec(
            num_scalar_prefetch=0,
            grid=grid,
            in_specs=[
                pl.BlockSpec(memory_space=pltpu.MemorySpace.SMEM),    # scale (1,1)
                pl.BlockSpec((block_rows, _LANE), lambda i: (i, 0)),  # x tile
            ],
            out_specs=pl.BlockSpec((block_rows, _LANE), lambda i: (i, 0)),
        ),
        compiler_params=pltpu.CompilerParams(
            dimension_semantics=("parallel",),
            vmem_limit_bytes=_VMEM_LIMIT_BYTES,
        ),
        cost_estimate=pl.CostEstimate(
            flops=n_elems,
            transcendentals=0,
            bytes_accessed=n_elems * (in_itemsize + out_itemsize),
        ),
    )(scale_arr, slab)


def constant_scaler(x: jax.Array, scale) -> jax.Array:
    """y = x * scale (ConstantScaler.forward), computed in a Pallas TPU kernel."""
    orig_shape = x.shape
    in_dtype = x.dtype
    # PyTorch promotion: float_tensor * f32-0d-tensor keeps the tensor dtype;
    # int_tensor * float scalar promotes to float32.
    out_dtype = in_dtype if jnp.issubdtype(in_dtype, jnp.floating) else jnp.float32
    n = x.size
    scale_f32 = jnp.asarray(scale, dtype=jnp.float32)

    if n == 0:
        return x.astype(out_dtype)

    flat = x.reshape(-1)                   # free view for contiguous data
    n_main = (n // _LANE) * _LANE          # 128-aligned prefix

    if n_main == n:
        # Fully aligned: zero extra copies around the kernel.
        slab = flat.reshape(n // _LANE, _LANE)
        return _scale_slab(slab, scale_f32, out_dtype).reshape(orig_shape)

    # Misaligned size: kernel on the aligned prefix, plain jnp on the <128-elem
    # tail. One output-sized concat instead of the old pad + slice (3x traffic).
    tail_out = flat[n_main:].astype(out_dtype) * scale_f32.astype(out_dtype)
    if n_main == 0:
        return tail_out.reshape(orig_shape)
    slab = flat[:n_main].reshape(n_main // _LANE, _LANE)
    main_out = _scale_slab(slab, scale_f32, out_dtype).reshape(-1)
    # TODO(synk): the concatenate still costs one extra output-sized write on
    # the misaligned path; acceptable, and only hit when numel % 128 != 0.
    return jnp.concatenate([main_out, tail_out]).reshape(orig_shape)


if __name__ == "__main__":
    key = jax.random.PRNGKey(0)
    scale = 2.5  # ConstantScaler(scale=2.5)

    # NCHW input like the PyTorch module would see: batch=2, channels=4, 16x16.
    x = jax.random.normal(key, (2, 4, 16, 16), dtype=jnp.float32)
    y = jax.block_until_ready(constant_scaler(x, scale))
    y_ref = x * jnp.float32(scale)
    assert y.shape == x.shape and y.dtype == x.dtype
    assert jnp.allclose(y, y_ref, rtol=1e-6, atol=1e-6)

    # Tiny aligned input (rows < 8): single full-extent block.
    x2 = jax.random.normal(jax.random.PRNGKey(0), (256,), dtype=jnp.bfloat16)
    y2 = jax.block_until_ready(constant_scaler(x2, scale))
    y2_ref = x2 * jnp.asarray(scale, dtype=jnp.bfloat16)
    assert y2.dtype == jnp.bfloat16
    assert jnp.allclose(y2.astype(jnp.float32), y2_ref.astype(jnp.float32),
                        rtol=1e-2, atol=1e-2)

    # Misaligned sizes: pure-tail path (<128) and prefix+tail path.
    x3 = jax.random.normal(jax.random.PRNGKey(1), (100,), dtype=jnp.float32)
    y3 = jax.block_until_ready(constant_scaler(x3, scale))
    assert jnp.allclose(y3, x3 * jnp.float32(scale), rtol=1e-6, atol=1e-6)

    x4 = jax.random.normal(jax.random.PRNGKey(2), (3, 50), dtype=jnp.float32)
    y4 = jax.block_until_ready(constant_scaler(x4, scale))
    assert y4.shape == x4.shape
    assert jnp.allclose(y4, x4 * jnp.float32(scale), rtol=1e-6, atol=1e-6)

    print("KERNEL_OK")
</pallas_src>

<mosaic_0001>
module attributes {stable_mosaic.version = 11 : i64} {
  func.func @_scale_kernel(%arg0: i32, %arg1: memref<1x1xf32, #tpu.memory_space<smem>>, %arg2: memref<16x128xf32, #tpu.memory_space<vmem>>, %arg3: memref<16x128xf32, #tpu.memory_space<vmem>>) attributes {dimension_semantics = [#tpu.dimension_semantics<parallel>], iteration_bounds = array<i64: 1>, scalar_prefetch = 0 : i64, scratch_operands = 0 : i64, tpu.core_type = #tpu.core_type<tc>, window_params = [{transform_indices = @transform_0, window_bounds = array<i64: 1, 1>}, {transform_indices = @transform_1, window_bounds = array<i64: 16, 128>}, {transform_indices = @transform_2, window_bounds = array<i64: 16, 128>}]} {
    %c0 = arith.constant 0 : index
    %c0_0 = arith.constant 0 : index
    %0 = memref.load %arg1[%c0, %c0_0] : memref<1x1xf32, #tpu.memory_space<smem>>
    %c0_1 = arith.constant 0 : index
    %c0_2 = arith.constant 0 : index
    %1 = vector.load %arg2[%c0_1, %c0_2] : memref<16x128xf32, #tpu.memory_space<vmem>>, vector<16x128xf32>
    %2 = vector.broadcast %0 : f32 to vector<16x128xf32>
    %3 = arith.mulf %1, %2 : vector<16x128xf32>
    %c0_3 = arith.constant 0 : index
    %c0_4 = arith.constant 0 : index
    %4 = vector.load %arg3[%c0_3, %c0_4] : memref<16x128xf32, #tpu.memory_space<vmem>>, vector<16x128xf32>
    tpu.vector_store %arg3[%c0_3, %c0_4], %3 {strides = array<i32>} : memref<16x128xf32, #tpu.memory_space<vmem>>, vector<16x128xf32>,
    return
  }
  func.func @transform_0(%arg0: i32) -> (i32, i32) {
    %c0_i32 = arith.constant 0 : i32
    %c0_i32_0 = arith.constant 0 : i32
    %c0_i32_1 = arith.constant 0 : i32
    return %c0_i32, %c0_i32_0 : i32, i32
  }
  func.func @transform_1(%arg0: i32) -> (i32, i32) {
    %c0_i32 = arith.constant 0 : i32
    %c0_i32_0 = arith.constant 0 : i32
    return %arg0, %c0_i32 : i32, i32
  }
  func.func @transform_2(%arg0: i32) -> (i32, i32) {
    %c0_i32 = arith.constant 0 : i32
    %c0_i32_0 = arith.constant 0 : i32
    return %arg0, %c0_i32 : i32, i32
  }
}

</mosaic_0001>

<llo_original>
// kernel: tpu_custom_call.1
$region0: #{tpu_custom_call.1}
  #allocation0 [shape = 'u32[]', space=smem, size = 0x4, offset = 0x4, fixed_abs, tag = 'smem constant byte address 0x4 - core index']
  #allocation1 [shape = 'u32[144,128]{1,0:T(1,128)}', space=vmem, size = 0x12000, scoped, tag = 'internal scratch']
  #allocation2 [shape = 'f32[1,1]{1,0:T(1,128)S(6)}', space=smem, size = 0x200, scoped, tag = 'scoped memory for tpu_custom_call.1']
  %s0 = inlined_call_operand.<no memory space> [shape: f32[1,1], index: 0, kind: input, shape index: {}]
  %s1 = inlined_call_operand.hbm [shape: f32[16,128], index: 1, kind: input, shape index: {}]
  %s2 = inlined_call_operand.hbm [shape: f32[16,128], index: 2, kind: output, shape index: {}]
  %s3 = sld [smem:[#allocation0]]
  $region22: #{tpu_custom_call.1} parent=0
    _
  %s5 = ssub.s32 1, %s3
  %s6 = scalar_select 0, %s5, %s3
  %7 = sst [smem:[#allocation2]] %s0
  $region1: #{tpu_custom_call.1} parent=0
    #allocation3 [shape = 'u8[8192]{0}', space=vmem, size = 0x2000, scoped, tag = 'input window, operand 1, single buffered']
    #allocation4 [shape = 's32[1]{0}', space=sflag, size = 0x4, scoped, tag = 'scoped memory for tpu_custom_call.1']
    #allocation5 [shape = 's32[1]{0}', space=sflag, size = 0x4, scoped, tag = 'scoped memory for tpu_custom_call.1']
    #allocation6 [shape = 'u8[8192]{0}', space=vmem, size = 0x2000, scoped, tag = 'output window, operand 0, single buffered']
    %8 = vsyncpa [#allocation4], 0
    %9 = vsyncpa [#allocation5], 0
    // Predicated region
    $region2: #{tpu_custom_call.1} parent=1 // pred_check
      _
    $region3: #{tpu_custom_call.1} parent=1 // pred_check_branch
      %11 = sbr.rel (0) target = $region5
    $region4: #{tpu_custom_call.1} parent=1 // pred_region
      _
    $region5: #{tpu_custom_call.1} parent=1 // pred_fallthru
      _
    // Predicated region
    $region6: #{tpu_custom_call.1} parent=1 // pred_check
      _
    $region7: #{tpu_custom_call.1} parent=1 // pred_check_branch
      %13 = sbr.rel (0) target = $region9
    $region8: #{tpu_custom_call.1} parent=1 // pred_region
      %s15 = ssub.s32 256, 256
      %16 = vsyncadd [#allocation4], %s15
      %s17 = sshll.u32 [#allocation3], 4
      %s18 = int_to_ptr.vmem [resolvable:$true] %s17
      %23 = dma.hbm_to_vmem [thread:$0]  %s1, 256, %s18, [#allocation4], 128, 128, 8
    $region9: #{tpu_custom_call.1} parent=1 // pred_fallthru
      _
    // Predicated region
    $region10: #{tpu_custom_call.1} parent=1 // pred_check
      _
    $region11: #{tpu_custom_call.1} parent=1 // pred_check_branch
      %25 = sbr.rel (0) target = $region13
    $region12: #{tpu_custom_call.1} parent=1 // pred_region
      %26 = dma.done [#allocation4], 256
    $region13: #{tpu_custom_call.1} parent=1 // pred_fallthru
      _
    %s27 = sld [smem:[#allocation2]]
    %v28 = vld [vmem:[#allocation3] sm:$0xff]
    %v29 = vld [vmem:[#allocation3 + $0x8] sm:$0xff]
    %v30 = vstv %s27
    %v31 = vmul.f32 %v28, %v30
    %v32 = vmul.f32 %v29, %v30
    %33 = vst [vmem:[#allocation6] sm:$0xff] %v31
    %34 = vst [vmem:[#allocation6 + $0x8] sm:$0xff] %v32
    // Predicated region
    $region14: #{tpu_custom_call.1} parent=1 // pred_check
      _
    $region15: #{tpu_custom_call.1} parent=1 // pred_check_branch
      %36 = sbr.rel (0) target = $region17
    $region16: #{tpu_custom_call.1} parent=1 // pred_region
      %s38 = ssub.s32 256, 256
      %39 = vsyncadd [#allocation5], %s38
      %s40 = sshll.u32 [#allocation6], 4
      %s41 = int_to_ptr.vmem [resolvable:$true] %s40
      %46 = dma.vmem_to_hbm [thread:$0]  %s41, 256, %s2, [#allocation5], 128, 128, 8
    $region17: #{tpu_custom_call.1} parent=1 // pred_fallthru
      _
    // Predicated region
    $region18: #{tpu_custom_call.1} parent=1 // pred_check
      _
    $region19: #{tpu_custom_call.1} parent=1 // pred_check_branch
      %48 = sbr.rel (0) target = $region21
    $region20: #{tpu_custom_call.1} parent=1 // pred_region
      %49 = dma.done [#allocation5], 256
    $region21: #{tpu_custom_call.1} parent=1 // pred_fallthru
      _
    %50 = vsyncpa [#allocation4], 1
    %51 = vsyncpa [#allocation5], 1

</llo_original>
